<compile_context>
chip_gen: v7x
topology: tpu7x:2x2x1
jax: 0.10.0
libtpu: 0.0.40
codegen_flags: <defaults>
</compile_context>

<pallas_src>
import functools

import jax
import jax.numpy as jnp
from jax.experimental import pallas as pl
from jax.experimental.pallas import tpu as pltpu


def _round_up(x, m):
    return ((x + m - 1) // m) * m


def _npair_loss_kernel(fa_ref, fp_ref, tgt_ref, out_ref,
                       acc_ref, sqa_ref, sqp_ref, *,
                       half, mask_rows, mask_cols):
    i = pl.program_id(0)                 # anchor-row tile   ("parallel")
    k = pl.program_id(1)                 # contraction tile  ("arbitrary", serpentine)
    nk = pl.num_programs(1)
    tm, ncols = acc_ref.shape

    @pl.when(k == 0)
    def _init():
        acc_ref[...] = jnp.zeros_like(acc_ref)
        sqa_ref[...] = jnp.zeros_like(sqa_ref)
        sqp_ref[...] = jnp.zeros_like(sqp_ref)

    fa = fa_ref[...]                     # (tm, tk)     native dtype (bf16 ok)
    fp = fp_ref[...]                     # (ncols, tk)  native dtype

    # MXU: both operands contract on their last axis -> no in-kernel transpose.
    acc_ref[...] += jax.lax.dot_general(
        fa, fp,
        dimension_numbers=(((1,), (1,)), ((), ())),
        preferred_element_type=jnp.float32)

    # Fused L2 term: sum-of-squares rides on tiles the matmul already DMA'd.
    fa32 = fa.astype(jnp.float32)
    sqa_ref[...] += jnp.sum(fa32 * fa32, axis=-1, keepdims=True)

    @pl.when(i == 0)                     # positives counted exactly once
    def _accum_pos_sq():
        fp32 = fp.astype(jnp.float32)
        sqp_ref[...] += jnp.sum(fp32 * fp32, axis=-1, keepdims=True)

    @pl.when(k == nk - 1)
    def _finalize():
        logits = acc_ref[...]                                        # (tm, ncols)
        col_ids = jax.lax.broadcasted_iota(jnp.int32, (tm, ncols), 1)

        # Numerically stable logsumexp (column mask only if padding exists).
        if mask_cols:
            masked = jnp.where(col_ids < half, logits, -1e30)
        else:
            masked = logits
        m = jnp.max(masked, axis=-1, keepdims=True)
        lse = jnp.log(jnp.sum(jnp.exp(masked - m), axis=-1, keepdims=True)) + m

        # logit[row, target[row]] via in-register iota mask (no dense one-hot).
        tgt = tgt_ref[...]                                           # (tm, 1) int32
        tgt_logit = jnp.sum(jnp.where(col_ids == tgt, logits, 0.0),
                            axis=-1, keepdims=True)                  # (tm, 1)

        per_row = lse - tgt_logit
        if mask_rows:                                                # only if padded
            row_ids = i * tm + jax.lax.broadcasted_iota(jnp.int32, (tm, 1), 0)
            per_row = jnp.where(row_ids < half, per_row, 0.0)
        ce_partial = jnp.sum(per_row)

        # Sum of anchor row L2 norms (padded rows are all-zero -> sqrt(0) = 0).
        anchor_norm = jnp.sum(jnp.sqrt(sqa_ref[...]))

        out_ref[0, 0] = ce_partial

        @pl.when(i == 0)                 # positives norm: only this tile pays the sqrt
        def _with_pos_norm():
            out_ref[0, 1] = anchor_norm + jnp.sum(jnp.sqrt(sqp_ref[...]))

        @pl.when(i != 0)
        def _without_pos_norm():
            out_ref[0, 1] = anchor_norm


def _vmem_capacity_bytes():
    """Physical VMEM of the attached TPU; conservative fallback if unknown."""
    try:
        return int(pltpu.get_tpu_info().vmem_capacity_bytes)
    except Exception:
        return 64 << 20      # assume the smallest (v7x-sized) VMEM


def npair_loss(feature, target, l2_reg=0.003):
    """feature: (B, D) float (f32 or bf16); target: (B/2,) int labels in [0, B/2)."""
    b, d = feature.shape
    half = b // 2                               # module assumes even batch
    fa = feature[:half]
    fp = feature[half:]

    itemsize = jnp.dtype(feature.dtype).itemsize
    sub = {4: 8, 2: 16, 1: 32}.get(itemsize, 8)           # sublane multiple per dtype

    vmem_cap = _vmem_capacity_bytes()
    big_vmem = vmem_cap >= (96 << 20)                      # v5e/v6e (128 MiB) vs v7x (64 MiB)
    vmem_budget = (vmem_cap * 3) // 4                      # ~96 MiB or ~48 MiB

    # --- logits column padding: lane-dense, independent of the row tile -------
    col_mult = 256 if half >= 256 else 128
    half_cols_p = _round_up(max(half, 1), col_mult)

    # --- anchor-row tile -------------------------------------------------------
    tm_cap = 512 if big_vmem else 256                      # halves fp re-stream on v5e/v6e
    if half >= tm_cap:
        tm = tm_cap
    elif (not big_vmem) and half > sub:
        # v7x: split small/medium batches so nr >= 2 and both TensorCores work.
        tm = _round_up((half + 1) // 2, sub)
    else:
        tm = _round_up(max(half, 1), sub)
    # Keep the f32 logits accumulator within half of the VMEM budget.
    while tm > sub and tm * half_cols_p * 4 > vmem_budget // 2:
        tm = max(sub, _round_up(tm // 2, sub))

    half_rows_p = _round_up(half, tm)
    nr = half_rows_p // tm

    # --- contraction tile: grow toward D under the double-buffer budget --------
    d_p0 = _round_up(max(d, 1), 128)
    acc_bytes = tm * half_cols_p * 4 + (tm + half_cols_p) * 4
    per_col = 2 * (tm + half_cols_p) * itemsize            # double-buffered fa + fp per K col
    avail = max(vmem_budget - acc_bytes - (1 << 20), per_col * 128)
    tk = int(min(d_p0, max(128, (avail // per_col) // 128 * 128)))
    d_p = _round_up(d, tk)
    nk = d_p // tk

    # --- padding (zeros are masked / harmless inside the kernel) ---------------
    fa_p = jnp.pad(fa, ((0, half_rows_p - half), (0, d_p - d)))
    fp_p = jnp.pad(fp, ((0, half_cols_p - half), (0, d_p - d)))
    tgt_p = jnp.pad(target.astype(jnp.int32),
                    (0, half_rows_p - half)).reshape(half_rows_p, 1)

    # --- serpentine contraction axis: fp block index is constant across row
    #     tile boundaries, so the positives tile is never redundantly re-fetched.
    def _k_serp(i, k):
        parity = jax.lax.rem(i, 2)
        return k + parity * (nk - 1 - 2 * k)

    fa_map = lambda i, k: (i, _k_serp(i, k))
    fp_map = lambda i, k: (0, _k_serp(i, k))
    tgt_map = lambda i, k: (i, 0)

    grid_spec = pltpu.PrefetchScalarGridSpec(
        num_scalar_prefetch=0,
        grid=(nr, nk),
        in_specs=[
            pl.BlockSpec((tm, tk), fa_map),                # anchors
            pl.BlockSpec((half_cols_p, tk), fp_map),       # positives (lane-dense cols)
            pl.BlockSpec((tm, 1), tgt_map),                # targets
        ],
        out_specs=pl.BlockSpec((1, 2), lambda i, k: (i, 0),
                               memory_space=pltpu.MemorySpace.SMEM),
        scratch_shapes=[
            pltpu.VMEM((tm, half_cols_p), jnp.float32),    # logits accumulator
            pltpu.VMEM((tm, 1), jnp.float32),              # anchor sum-of-squares
            pltpu.VMEM((half_cols_p, 1), jnp.float32),     # positive sum-of-squares
        ],
    )

    est = (2 * (tm + half_cols_p) * tk * itemsize          # double-buffered fa / fp tiles
           + 2 * tm * 4                                    # double-buffered target tiles
           + acc_bytes)                                    # accumulators
    vmem_limit = int(min(vmem_budget, max(16 << 20, est + est // 2)))

    partials = pl.pallas_call(
        functools.partial(_npair_loss_kernel, half=half,
                          mask_rows=(half != half_rows_p),
                          mask_cols=(half != half_cols_p)),
        out_shape=jax.ShapeDtypeStruct((nr, 2), jnp.float32),
        grid_spec=grid_spec,
        compiler_params=pltpu.CompilerParams(
            dimension_semantics=("parallel", "arbitrary"),
            vmem_limit_bytes=vmem_limit),
    )(fa_p, fp_p, tgt_p)

    ce = jnp.sum(partials[:, 0]) / half          # cross_entropy reduction='mean'
    l2 = jnp.sum(partials[:, 1]) / b             # sum(||feature_i||_2) / B
    return ce + l2_reg * l2


def _reference_npair_loss(feature, target, l2_reg=0.003):
    b = feature.shape[0]
    half = b // 2
    fa, fp = feature[:half], feature[half:]
    logit = jnp.dot(fa, fp.T, preferred_element_type=jnp.float32)
    logp = jax.nn.log_softmax(logit, axis=-1)
    ce = -jnp.mean(logp[jnp.arange(half), target])
    l2 = jnp.sum(jnp.linalg.norm(feature, axis=1)) / b
    return ce + l2_reg * l2


def _make_inputs(key, b, d):
    k1, k2 = jax.random.split(key)
    # Quantize features to the bf16 grid so kernel-vs-reference differences are
    # pure accumulation-order noise regardless of the MXU pass strategy.
    feature = jax.random.normal(k1, (b, d), dtype=jnp.float32)
    feature = feature.astype(jnp.bfloat16).astype(jnp.float32)
    target = jax.random.randint(k2, (b // 2,), 0, b // 2, dtype=jnp.int32)
    return feature, target


if __name__ == "__main__":
    key = jax.random.PRNGKey(0)

    # (B, D): small demo shape, row/col padding, wide D, multi-row-tile + masked tail.
    shapes = [(8, 32), (24, 200), (16, 1152), (1030, 384)]

    for (B, D) in shapes:
        key, subkey = jax.random.split(key)
        feature, target = _make_inputs(subkey, B, D)

        # float32 path
        loss = jax.block_until_ready(npair_loss(feature, target, l2_reg=0.003))
        ref = _reference_npair_loss(feature, target, l2_reg=0.003)
        assert jnp.allclose(loss, ref, rtol=1e-4, atol=1e-4), (B, D, loss, ref)

        # bfloat16 path (native MXU dtype, 16-row sublane tiles)
        f16 = feature.astype(jnp.bfloat16)
        loss16 = jax.block_until_ready(npair_loss(f16, target, l2_reg=0.003))
        ref16 = _reference_npair_loss(f16.astype(jnp.float32), target, l2_reg=0.003)
        assert jnp.allclose(loss16, ref16, rtol=5e-3, atol=5e-3), (B, D, loss16, ref16)

    print("KERNEL_OK")
</pallas_src>

<mosaic_0001>
module attributes {stable_mosaic.version = 11 : i64} {
  func.func @_npair_loss_kernel(%arg0: i32, %arg1: i32, %arg2: memref<8x128xf32, #tpu.memory_space<vmem>>, %arg3: memref<128x128xf32, #tpu.memory_space<vmem>>, %arg4: memref<8x1xi32, #tpu.memory_space<vmem>>, %arg5: memref<1x2xf32, #tpu.memory_space<smem>>, %arg6: memref<8x128xf32, #tpu.memory_space<vmem>>, %arg7: memref<8x1xf32, #tpu.memory_space<vmem>>, %arg8: memref<128x1xf32, #tpu.memory_space<vmem>>) attributes {dimension_semantics = [#tpu.dimension_semantics<parallel>, #tpu.dimension_semantics<arbitrary>], iteration_bounds = array<i64: 1, 1>, scalar_prefetch = 0 : i64, scratch_operands = 3 : i64, tpu.core_type = #tpu.core_type<tc>, window_params = [{transform_indices = @transform_0, window_bounds = array<i64: 8, 128>}, {transform_indices = @transform_1, window_bounds = array<i64: 128, 128>}, {transform_indices = @transform_2, window_bounds = array<i64: 8, 1>}, {transform_indices = @transform_3, window_bounds = array<i64: 1, 2>}]} {
    %c0_i32 = arith.constant 0 : i32
    %0 = arith.cmpi eq, %arg1, %c0_i32 : i32
    %1 = arith.extui %0 : i1 to i32
    %c0_i32_0 = arith.constant 0 : i32
    %2 = arith.cmpi ne, %1, %c0_i32_0 : i32
    scf.if %2 {
      %cst_17 = arith.constant 0.000000e+00 : f32
      %21 = vector.broadcast %cst_17 : f32 to vector<8x128xf32>
      %c0_18 = arith.constant 0 : index
      %c0_19 = arith.constant 0 : index
      %22 = vector.load %arg6[%c0_18, %c0_19] : memref<8x128xf32, #tpu.memory_space<vmem>>, vector<8x128xf32>
      tpu.vector_store %arg6[%c0_18, %c0_19], %21 {strides = array<i32>} : memref<8x128xf32, #tpu.memory_space<vmem>>, vector<8x128xf32>,
      %cst_20 = arith.constant 0.000000e+00 : f32
      %23 = vector.broadcast %cst_20 : f32 to vector<8x1xf32>
      %c0_21 = arith.constant 0 : index
      %c0_22 = arith.constant 0 : index
      %24 = vector.load %arg7[%c0_21, %c0_22] : memref<8x1xf32, #tpu.memory_space<vmem>>, vector<8x1xf32>
      tpu.vector_store %arg7[%c0_21, %c0_22], %23 {strides = array<i32>} : memref<8x1xf32, #tpu.memory_space<vmem>>, vector<8x1xf32>,
      %cst_23 = arith.constant 0.000000e+00 : f32
      %25 = vector.broadcast %cst_23 : f32 to vector<128x1xf32>
      %c0_24 = arith.constant 0 : index
      %c0_25 = arith.constant 0 : index
      %26 = vector.load %arg8[%c0_24, %c0_25] : memref<128x1xf32, #tpu.memory_space<vmem>>, vector<128x1xf32>
      tpu.vector_store %arg8[%c0_24, %c0_25], %25 {strides = array<i32>} : memref<128x1xf32, #tpu.memory_space<vmem>>, vector<128x1xf32>,
    } else {
    }
    %c0 = arith.constant 0 : index
    %c0_1 = arith.constant 0 : index
    %3 = vector.load %arg2[%c0, %c0_1] : memref<8x128xf32, #tpu.memory_space<vmem>>, vector<8x128xf32>
    %c0_2 = arith.constant 0 : index
    %c0_3 = arith.constant 0 : index
    %4 = vector.load %arg3[%c0_2, %c0_3] : memref<128x128xf32, #tpu.memory_space<vmem>>, vector<128x128xf32>
    %c0_4 = arith.constant 0 : index
    %c0_5 = arith.constant 0 : index
    %5 = vector.load %arg6[%c0_4, %c0_5] : memref<8x128xf32, #tpu.memory_space<vmem>>, vector<8x128xf32>
    %cst = arith.constant dense<0.000000e+00> : vector<8x128xf32>
    %6 = tpu.matmul %3, %4, %cst {dimension_numbers = #tpu.dot_dimension_numbers<[1], [1], [0], [0], [0, 0, 1, 0], [], []>} : vector<8x128xf32>, vector<128x128xf32>, vector<8x128xf32> -> vector<8x128xf32>
    %7 = arith.addf %5, %6 : vector<8x128xf32>
    %c0_6 = arith.constant 0 : index
    %c0_7 = arith.constant 0 : index
    %8 = vector.load %arg6[%c0_6, %c0_7] : memref<8x128xf32, #tpu.memory_space<vmem>>, vector<8x128xf32>
    tpu.vector_store %arg6[%c0_6, %c0_7], %7 {strides = array<i32>} : memref<8x128xf32, #tpu.memory_space<vmem>>, vector<8x128xf32>,
    %c0_8 = arith.constant 0 : index
    %c0_9 = arith.constant 0 : index
    %9 = vector.load %arg7[%c0_8, %c0_9] : memref<8x1xf32, #tpu.memory_space<vmem>>, vector<8x1xf32>
    %10 = arith.mulf %3, %3 : vector<8x128xf32>
    %cst_10 = arith.constant dense<0.000000e+00> : vector<8xf32>
    %11 = vector.multi_reduction <add>, %10, %cst_10 [1] : vector<8x128xf32> to vector<8xf32>
    %12 = vector.shape_cast %11 : vector<8xf32> to vector<8x1xf32>
    %13 = arith.addf %9, %12 : vector<8x1xf32>
    %c0_11 = arith.constant 0 : index
    %c0_12 = arith.constant 0 : index
    %14 = vector.load %arg7[%c0_11, %c0_12] : memref<8x1xf32, #tpu.memory_space<vmem>>, vector<8x1xf32>
    tpu.vector_store %arg7[%c0_11, %c0_12], %13 {strides = array<i32>} : memref<8x1xf32, #tpu.memory_space<vmem>>, vector<8x1xf32>,
    %c0_i32_13 = arith.constant 0 : i32
    %15 = arith.cmpi eq, %arg0, %c0_i32_13 : i32
    %16 = arith.extui %15 : i1 to i32
    %c0_i32_14 = arith.constant 0 : i32
    %17 = arith.cmpi ne, %16, %c0_i32_14 : i32
    scf.if %17 {
      %c0_17 = arith.constant 0 : index
      %c0_18 = arith.constant 0 : index
      %21 = vector.load %arg8[%c0_17, %c0_18] : memref<128x1xf32, #tpu.memory_space<vmem>>, vector<128x1xf32>
      %22 = arith.mulf %4, %4 : vector<128x128xf32>
      %cst_19 = arith.constant dense<0.000000e+00> : vector<128xf32>
      %23 = vector.multi_reduction <add>, %22, %cst_19 [1] : vector<128x128xf32> to vector<128xf32>
      %24 = vector.shape_cast %23 : vector<128xf32> to vector<128x1xf32>
      %25 = arith.addf %21, %24 : vector<128x1xf32>
      %c0_20 = arith.constant 0 : index
      %c0_21 = arith.constant 0 : index
      %26 = vector.load %arg8[%c0_20, %c0_21] : memref<128x1xf32, #tpu.memory_space<vmem>>, vector<128x1xf32>
      tpu.vector_store %arg8[%c0_20, %c0_21], %25 {strides = array<i32>} : memref<128x1xf32, #tpu.memory_space<vmem>>, vector<128x1xf32>,
    } else {
    }
    %c0_i32_15 = arith.constant 0 : i32
    %18 = arith.cmpi eq, %arg1, %c0_i32_15 : i32
    %19 = arith.extui %18 : i1 to i32
    %c0_i32_16 = arith.constant 0 : i32
    %20 = arith.cmpi ne, %19, %c0_i32_16 : i32
    scf.if %20 {
      %c0_17 = arith.constant 0 : index
      %c0_18 = arith.constant 0 : index
      %21 = vector.load %arg6[%c0_17, %c0_18] : memref<8x128xf32, #tpu.memory_space<vmem>>, vector<8x128xf32>
      %22 = tpu.iota {dimensions = array<i32: 1>} : vector<8x128xi32>
      %c4_i32 = arith.constant 4 : i32
      %23 = vector.broadcast %c4_i32 : i32 to vector<8x128xi32>
      %24 = arith.cmpi slt, %22, %23 : vector<8x128xi32>
      %cst_19 = arith.constant -1.000000e+30 : f32
      %25 = vector.broadcast %cst_19 : f32 to vector<8x128xf32>
      %26 = arith.select %24, %21, %25 : vector<8x128xi1>, vector<8x128xf32>
      %cst_20 = arith.constant dense<0xFF800000> : vector<8xf32>
      %27 = vector.multi_reduction <maximumf>, %26, %cst_20 [1] : vector<8x128xf32> to vector<8xf32>
      %28 = vector.shape_cast %27 : vector<8xf32> to vector<8x1xf32>
      %29 = vector.broadcast %28 : vector<8x1xf32> to vector<8x128xf32>
      %30 = arith.subf %26, %29 : vector<8x128xf32>
      %31 = math.exp %30 : vector<8x128xf32>
      %cst_21 = arith.constant dense<0.000000e+00> : vector<8xf32>
      %32 = vector.multi_reduction <add>, %31, %cst_21 [1] : vector<8x128xf32> to vector<8xf32>
      %33 = vector.shape_cast %32 : vector<8xf32> to vector<8x1xf32>
      %34 = math.log %33 : vector<8x1xf32>
      %35 = arith.addf %34, %28 : vector<8x1xf32>
      %c0_22 = arith.constant 0 : index
      %c0_23 = arith.constant 0 : index
      %36 = vector.load %arg4[%c0_22, %c0_23] : memref<8x1xi32, #tpu.memory_space<vmem>>, vector<8x1xi32>
      %37 = vector.broadcast %36 : vector<8x1xi32> to vector<8x128xi32>
      %38 = arith.cmpi eq, %22, %37 : vector<8x128xi32>
      %cst_24 = arith.constant 0.000000e+00 : f32
      %39 = vector.broadcast %cst_24 : f32 to vector<8x128xf32>
      %40 = arith.select %38, %21, %39 : vector<8x128xi1>, vector<8x128xf32>
      %cst_25 = arith.constant dense<0.000000e+00> : vector<8xf32>
      %41 = vector.multi_reduction <add>, %40, %cst_25 [1] : vector<8x128xf32> to vector<8xf32>
      %42 = vector.shape_cast %41 : vector<8xf32> to vector<8x1xf32>
      %43 = arith.subf %35, %42 : vector<8x1xf32>
      %c8_i32 = arith.constant 8 : i32
      %44 = arith.muli %arg0, %c8_i32 : i32
      %45 = tpu.iota {dimensions = array<i32: 0>} : vector<8x1xi32>
      %46 = vector.broadcast %44 : i32 to vector<8x1xi32>
      %47 = arith.addi %46, %45 : vector<8x1xi32>
      %c4_i32_26 = arith.constant 4 : i32
      %48 = vector.broadcast %c4_i32_26 : i32 to vector<8x1xi32>
      %49 = arith.cmpi slt, %47, %48 : vector<8x1xi32>
      %cst_27 = arith.constant 0.000000e+00 : f32
      %50 = vector.broadcast %cst_27 : f32 to vector<8x1xf32>
      %51 = arith.select %49, %43, %50 : vector<8x1xi1>, vector<8x1xf32>
      %52 = vector.shape_cast %51 : vector<8x1xf32> to vector<1x8x1xf32>
      %cst_28 = arith.constant dense<0.000000e+00> : vector<1xf32>
      %53 = vector.multi_reduction <add>, %52, %cst_28 [1, 2] : vector<1x8x1xf32> to vector<1xf32>
      %54 = vector.shape_cast %53 : vector<1xf32> to vector<1x1x1xf32>
      %55 = vector.extract %54[0, 0, 0] : f32 from vector<1x1x1xf32>
      %c0_29 = arith.constant 0 : index
      %c0_30 = arith.constant 0 : index
      %56 = vector.load %arg7[%c0_29, %c0_30] : memref<8x1xf32, #tpu.memory_space<vmem>>, vector<8x1xf32>
      %57 = math.sqrt %56 : vector<8x1xf32>
      %58 = vector.shape_cast %57 : vector<8x1xf32> to vector<1x8x1xf32>
      %cst_31 = arith.constant dense<0.000000e+00> : vector<1xf32>
      %59 = vector.multi_reduction <add>, %58, %cst_31 [1, 2] : vector<1x8x1xf32> to vector<1xf32>
      %60 = vector.shape_cast %59 : vector<1xf32> to vector<1x1x1xf32>
      %61 = vector.extract %60[0, 0, 0] : f32 from vector<1x1x1xf32>
      %c0_32 = arith.constant 0 : index
      %c0_33 = arith.constant 0 : index
      %62 = memref.load %arg5[%c0_32, %c0_33] : memref<1x2xf32, #tpu.memory_space<smem>>
      memref.store %55, %arg5[%c0_32, %c0_33] : memref<1x2xf32, #tpu.memory_space<smem>>
      %c0_i32_34 = arith.constant 0 : i32
      %63 = arith.cmpi eq, %arg0, %c0_i32_34 : i32
      %64 = arith.extui %63 : i1 to i32
      %c0_i32_35 = arith.constant 0 : i32
      %65 = arith.cmpi ne, %64, %c0_i32_35 : i32
      scf.if %65 {
        %c0_38 = arith.constant 0 : index
        %c0_39 = arith.constant 0 : index
        %69 = vector.load %arg8[%c0_38, %c0_39] : memref<128x1xf32, #tpu.memory_space<vmem>>, vector<128x1xf32>
        %70 = math.sqrt %69 : vector<128x1xf32>
        %71 = vector.shape_cast %70 : vector<128x1xf32> to vector<1x128x1xf32>
        %cst_40 = arith.constant dense<0.000000e+00> : vector<1xf32>
        %72 = vector.multi_reduction <add>, %71, %cst_40 [1, 2] : vector<1x128x1xf32> to vector<1xf32>
        %73 = vector.shape_cast %72 : vector<1xf32> to vector<1x1x1xf32>
        %74 = vector.extract %73[0, 0, 0] : f32 from vector<1x1x1xf32>
        %75 = arith.addf %61, %74 : f32
        %c0_41 = arith.constant 0 : index
        %c1 = arith.constant 1 : index
        %76 = memref.load %arg5[%c0_41, %c1] : memref<1x2xf32, #tpu.memory_space<smem>>
        memref.store %75, %arg5[%c0_41, %c1] : memref<1x2xf32, #tpu.memory_space<smem>>
      } else {
      }
      %c0_i32_36 = arith.constant 0 : i32
      %66 = arith.cmpi ne, %arg0, %c0_i32_36 : i32
      %67 = arith.extui %66 : i1 to i32
      %c0_i32_37 = arith.constant 0 : i32
      %68 = arith.cmpi ne, %67, %c0_i32_37 : i32
      scf.if %68 {
        %c0_38 = arith.constant 0 : index
        %c1 = arith.constant 1 : index
        %69 = memref.load %arg5[%c0_38, %c1] : memref<1x2xf32, #tpu.memory_space<smem>>
        memref.store %61, %arg5[%c0_38, %c1] : memref<1x2xf32, #tpu.memory_space<smem>>
      } else {
      }
    } else {
    }
    return
  }
  func.func @transform_0(%arg0: i32, %arg1: i32) -> (i32, i32) {
    %c2_i32 = arith.constant 2 : i32
    %0 = arith.remsi %arg0, %c2_i32 : i32
    %c2_i32_0 = arith.constant 2 : i32
    %1 = arith.muli %c2_i32_0, %arg1 : i32
    %c0_i32 = arith.constant 0 : i32
    %2 = arith.subi %c0_i32, %1 : i32
    %3 = arith.muli %0, %2 : i32
    %4 = arith.addi %arg1, %3 : i32
    %c0_i32_1 = arith.constant 0 : i32
    return %arg0, %4 : i32, i32
  }
  func.func @transform_1(%arg0: i32, %arg1: i32) -> (i32, i32) {
    %c2_i32 = arith.constant 2 : i32
    %0 = arith.remsi %arg0, %c2_i32 : i32
    %c2_i32_0 = arith.constant 2 : i32
    %1 = arith.muli %c2_i32_0, %arg1 : i32
    %c0_i32 = arith.constant 0 : i32
    %2 = arith.subi %c0_i32, %1 : i32
    %3 = arith.muli %0, %2 : i32
    %4 = arith.addi %arg1, %3 : i32
    %c0_i32_1 = arith.constant 0 : i32
    %c0_i32_2 = arith.constant 0 : i32
    return %c0_i32_1, %4 : i32, i32
  }
  func.func @transform_2(%arg0: i32, %arg1: i32) -> (i32, i32) {
    %c0_i32 = arith.constant 0 : i32
    %c0_i32_0 = arith.constant 0 : i32
    return %arg0, %c0_i32 : i32, i32
  }
  func.func @transform_3(%arg0: i32, %arg1: i32) -> (i32, i32) {
    %c0_i32 = arith.constant 0 : i32
    %c0_i32_0 = arith.constant 0 : i32
    return %arg0, %c0_i32 : i32, i32
  }
}

</mosaic_0001>

<llo_original>
// kernel: tpu_custom_call.1
$region0: #{tpu_custom_call.1}
  #allocation0 [shape = 'u32[]', space=smem, size = 0x4, offset = 0x4, fixed_abs, tag = 'smem constant byte address 0x4 - core index']
  #allocation1 [shape = 'u32[144,128]{1,0:T(1,128)}', space=vmem, size = 0x12000, scoped, tag = 'internal scratch']
  #allocation2 [shape = 'f32[8,128]{1,0:T(8,128)}', space=vmem, size = 0x1000, scoped, tag = 'scratch operand']
  #allocation3 [shape = 'f32[8,1]{1,0:T(8,128)}', space=vmem, size = 0x1000, scoped, tag = 'scratch operand']
  #allocation4 [shape = 'f32[128,1]{1,0:T(8,128)}', space=vmem, size = 0x10000, scoped, tag = 'scratch operand']
  %s0 = inlined_call_operand.vmem [shape: f32[8,128], index: 0, kind: input, shape index: {}]
  %s1 = inlined_call_operand.hbm [shape: f32[128,128], index: 1, kind: input, shape index: {}]
  %s2 = inlined_call_operand.vmem [shape: s32[8,1], index: 2, kind: input, shape index: {}]
  %s3 = inlined_call_operand.hbm [shape: f32[1,2], index: 3, kind: output, shape index: {}]
  %s4 = sld [smem:[#allocation0]]
  $region46: #{tpu_custom_call.1} parent=0
    _
  %s6 = ssub.s32 1, %s4
  %s7 = scalar_select 0, %s6, %s4
  $region1: #{tpu_custom_call.1} parent=0
    #allocation5 [shape = 'u8[65536]{0}', space=vmem, size = 0x10000, scoped, tag = 'input window, operand 1, single buffered']
    #allocation6 [shape = 's32[1]{0}', space=sflag, size = 0x4, scoped, tag = 'scoped memory for tpu_custom_call.1']
    #allocation7 [shape = 's32[1]{0}', space=sflag, size = 0x4, scoped, tag = 'scoped memory for tpu_custom_call.1']
    #allocation8 [shape = 'u8[512]{0}', space=smem, size = 0x200, scoped, tag = 'output window, operand 0, single buffered']
    %8 = vsyncpa [#allocation6], 0
    %9 = vsyncpa [#allocation7], 0
    // Predicated region
    $region2: #{tpu_custom_call.1} parent=1 // pred_check
      _
    $region3: #{tpu_custom_call.1} parent=1 // pred_check_branch
      %11 = sbr.rel (0) target = $region5
    $region4: #{tpu_custom_call.1} parent=1 // pred_region
      %s12 = ssub.s32 0, 0
      %s13 = ssub.s32 0, 0
      %s14 = smul.u32 0, 2
      %s15 = ssub.s32 0, %s14
      %s16 = smul.u32 0, %s15
      %s17 = sadd.s32 0, %s16
      %p18 = scmp.lt.s32.totalorder %s17, 0
      %s19 = scalar_select %p18, %s17, 0
      %s20 = smul.addr %s19, 8
      %s21 = scalar_lea.vmem %s0, %s20
      %s22 = ssub.s32 0, 0
      %s23 = ssub.s32 0, 0
      %s24 = smul.u32 0, 2
      %s25 = ssub.s32 0, %s24
      %s26 = smul.u32 0, %s25
      %s27 = sadd.s32 0, %s26
    $region5: #{tpu_custom_call.1} parent=1 // pred_fallthru
      _
    // Predicated region
    $region6: #{tpu_custom_call.1} parent=1 // pred_check
      _
    $region7: #{tpu_custom_call.1} parent=1 // pred_check_branch
      %29 = sbr.rel (0) target = $region9
    $region8: #{tpu_custom_call.1} parent=1 // pred_region
      %s30 = ssub.s32 0, 0
      %s31 = ssub.s32 0, 0
      %s32 = smul.u32 0, 2
      %s33 = ssub.s32 0, %s32
      %s34 = smul.u32 0, %s33
      %s35 = sadd.s32 0, %s34
      %s37 = ssub.s32 2048, 2048
      %38 = vsyncadd [#allocation6], %s37
      %s39 = smul.addr %s35, 128
      %s40 = scalar_lea.hbm %s1, %s39
      %s41 = sshll.u32 [#allocation5], 4
      %s42 = int_to_ptr.vmem [resolvable:$true] %s41
      %47 = dma.hbm_to_vmem [thread:$0]  %s40, 2048, %s42, [#allocation6], 128, 128, 8
    $region9: #{tpu_custom_call.1} parent=1 // pred_fallthru
      _
    // Predicated region
    $region10: #{tpu_custom_call.1} parent=1 // pred_check
      _
    $region11: #{tpu_custom_call.1} parent=1 // pred_check_branch
      %49 = sbr.rel (0) target = $region13
    $region12: #{tpu_custom_call.1} parent=1 // pred_region
      _
    $region13: #{tpu_custom_call.1} parent=1 // pred_fallthru
      _
    // Predicated region
    $region14: #{tpu_custom_call.1} parent=1 // pred_check
      _
    $region15: #{tpu_custom_call.1} parent=1 // pred_check_branch
      %51 = sbr.rel (0) target = $region17
    $region16: #{tpu_custom_call.1} parent=1 // pred_region
      %52 = dma.done [#allocation6], 2048
    $region17: #{tpu_custom_call.1} parent=1 // pred_fallthru
      _
    %s53 = ssub.s32 0, 0
    %s54 = ssub.s32 0, 0
    %s55 = smul.u32 0, 2
    %s56 = ssub.s32 0, %s55
    %s57 = smul.u32 0, %s56
    %s58 = sadd.s32 0, %s57
    %p59 = scmp.lt.s32.totalorder %s58, 0
    %s60 = scalar_select %p59, %s58, 0
    %s61 = smul.addr %s60, 8
    %s62 = scalar_lea.vmem %s0, %s61
    %s63 = ssub.s32 0, 0
    %s64 = ssub.s32 0, 0
    %s65 = smul.u32 0, 2
    %s66 = ssub.s32 0, %s65
    %s67 = smul.u32 0, %s66
    %s68 = sadd.s32 0, %s67
    %p69 = scmp.lt.s32.totalorder %s68, 0
    %s70 = scalar_select %p69, %s68, 0
    %s71 = smul.addr %s70, 8
    %s72 = scalar_lea.vmem %s0, %s71
    %s73 = ssub.s32 0, 0
    %s74 = ssub.s32 0, 0
    %s75 = smul.u32 0, 2
    %s76 = ssub.s32 0, %s75
    %s77 = smul.u32 0, %s76
    %s78 = sadd.s32 0, %s77
    %s79 = ssub.s32 0, 0
    %s80 = ssub.s32 0, 0
    %s81 = smul.u32 0, 2
    %s82 = ssub.s32 0, %s81
    %s83 = smul.u32 0, %s82
    %s84 = sadd.s32 0, %s83
    %p85 = scmp.eq.s32.totalorder 0, 0
    // Predicated region
    $region18: #{tpu_custom_call.1} parent=1 // pred_check
      %p86 = pneg %p85
    $region19: #{tpu_custom_call.1} parent=1 // pred_check_branch
      %88 = sbr.rel (%p86) target = $region21
    $region20: #{tpu_custom_call.1} parent=1 // pred_region
      %89 = vst [vmem:[#allocation2] sm:$0xff] 0.0
      %vm90 = vcmask 7168
      %91 = vst.msk [vmem:[#allocation3] sm:$0xff] %vm90, 0.0
      %92 = vst.msk [vmem:[#allocation4] sm:$0xff] %vm90, 0.0
      %93 = vst.msk [vmem:[#allocation4 + $0x8] sm:$0xff] %vm90, 0.0
      %94 = vst.msk [vmem:[#allocation4 + $0x10] sm:$0xff] %vm90, 0.0
      %95 = vst.msk [vmem:[#allocation4 + $0x18] sm:$0xff] %vm90, 0.0
      %96 = vst.msk [vmem:[#allocation4 + $0x20] sm:$0xff] %vm90, 0.0
      %97 = vst.msk [vmem:[#allocation4 + $0x28] sm:$0xff] %vm90, 0.0
      %98 = vst.msk [vmem:[#allocation4 + $0x30] sm:$0xff] %vm90, 0.0
      %99 = vst.msk [vmem:[#allocation4 + $0x38] sm:$0xff] %vm90, 0.0
      %100 = vst.msk [vmem:[#allocation4 + $0x40] sm:$0xff] %vm90, 0.0
      %101 = vst.msk [vmem:[#allocation4 + $0x48] sm:$0xff] %vm90, 0.0
      %102 = vst.msk [vmem:[#allocation4 + $0x50] sm:$0xff] %vm90, 0.0
      %103 = vst.msk [vmem:[#allocation4 + $0x58] sm:$0xff] %vm90, 0.0
      %104 = vst.msk [vmem:[#allocation4 + $0x60] sm:$0xff] %vm90, 0.0
      %105 = vst.msk [vmem:[#allocation4 + $0x68] sm:$0xff] %vm90, 0.0
      %106 = vst.msk [vmem:[#allocation4 + $0x70] sm:$0xff] %vm90, 0.0
      %107 = vst.msk [vmem:[#allocation4 + $0x78] sm:$0xff] %vm90, 0.0
    $region21: #{tpu_custom_call.1} parent=1 // pred_fallthru
      _
    %v108 = vld [vmem:[%s72] sm:$0xff]
    %v109 = vld [vmem:[#allocation5] sm:$0xff]
    %v110 = vld [vmem:[#allocation5 + $0x8] sm:$0xff]
    %v111 = vld [vmem:[#allocation5 + $0x10] sm:$0xff]
    %v112 = vld [vmem:[#allocation5 + $0x18] sm:$0xff]
    %v113 = vld [vmem:[#allocation5 + $0x20] sm:$0xff]
    %v114 = vld [vmem:[#allocation5 + $0x28] sm:$0xff]
    %v115 = vld [vmem:[#allocation5 + $0x30] sm:$0xff]
    %v116 = vld [vmem:[#allocation5 + $0x38] sm:$0xff]
    %v117 = vld [vmem:[#allocation5 + $0x40] sm:$0xff]
    %v118 = vld [vmem:[#allocation5 + $0x48] sm:$0xff]
    %v119 = vld [vmem:[#allocation5 + $0x50] sm:$0xff]
    %v120 = vld [vmem:[#allocation5 + $0x58] sm:$0xff]
    %v121 = vld [vmem:[#allocation5 + $0x60] sm:$0xff]
    %v122 = vld [vmem:[#allocation5 + $0x68] sm:$0xff]
    %v123 = vld [vmem:[#allocation5 + $0x70] sm:$0xff]
    %v124 = vld [vmem:[#allocation5 + $0x78] sm:$0xff]
    %v125 = vld [vmem:[#allocation2] sm:$0xff]
    %126 = vmatprep.subr.mxu0 0.0
    %127 = vmatpush1.xpose.msra.mxu0 %v109
    %128 = vmatprep.subr.mxu0 0.0
    %129 = vmatpush1.xpose.msra.mxu0 %v110
    %130 = vmatprep.subr.mxu0 0.0
    %131 = vmatpush1.xpose.msra.mxu0 %v111
    %132 = vmatprep.subr.mxu0 0.0
    %133 = vmatpush1.xpose.msra.mxu0 %v112
    %134 = vmatprep.subr.mxu0 0.0
    %135 = vmatpush1.xpose.msra.mxu0 %v113
    %136 = vmatprep.subr.mxu0 0.0
    %137 = vmatpush1.xpose.msra.mxu0 %v114
    %138 = vmatprep.subr.mxu0 0.0
    %139 = vmatpush1.xpose.msra.mxu0 %v115
    %140 = vmatprep.subr.mxu0 0.0
    %141 = vmatpush1.xpose.msra.mxu0 %v116
    %142 = vmatprep.subr.mxu0 0.0
    %143 = vmatpush1.xpose.msra.mxu0 %v117
    %144 = vmatprep.subr.mxu0 0.0
    %145 = vmatpush1.xpose.msra.mxu0 %v118
    %146 = vmatprep.subr.mxu0 0.0
    %147 = vmatpush1.xpose.msra.mxu0 %v119
    %148 = vmatprep.subr.mxu0 0.0
    %149 = vmatpush1.xpose.msra.mxu0 %v120
    %150 = vmatprep.subr.mxu0 0.0
    %151 = vmatpush1.xpose.msra.mxu0 %v121
    %152 = vmatprep.subr.mxu0 0.0
    %153 = vmatpush1.xpose.msra.mxu0 %v122
    %154 = vmatprep.subr.mxu0 0.0
    %155 = vmatpush1.xpose.msra.mxu0 %v123
    %156 = vmatprep.subr.mxu0 0.0
    %157 = vmatpush1.xpose.msra.mxu0 %v124
    %158 = vmatprep.subr.mxu0 0.0
    %159 = vmatpush1.xpose.msra.mxu0 0.0
    %160 = vmatprep.subr.mxu0 0.0
    %161 = vmatpush1.xpose.msra.mxu0 0.0
    %162 = vmatprep.subr.mxu0 0.0
    %163 = vmatpush1.xpose.msra.mxu0 0.0
    %164 = vmatprep.subr.mxu0 0.0
    %165 = vmatpush1.xpose.msra.mxu0 0.0
    %166 = vmatprep.subr.mxu0 0.0
    %167 = vmatpush1.xpose.msra.mxu0 0.0
    %168 = vmatprep.subr.mxu0 0.0
    %169 = vmatpush1.xpose.msra.mxu0 0.0
    %170 = vmatprep.subr.mxu0 0.0
    %171 = vmatpush1.xpose.msra.mxu0 0.0
    %172 = vmatprep.subr.mxu0 0.0
    %173 = vmatpush1.xpose.msra.mxu0 0.0
    %174 = vmatprep.subr.mxu0 0.0
    %175 = vmatpush1.xpose.msra.mxu0 0.0
    %176 = vmatprep.subr.mxu0 0.0
    %177 = vmatpush1.xpose.msra.mxu0 0.0
    %178 = vmatprep.subr.mxu0 0.0
    %179 = vmatpush1.xpose.msra.mxu0 0.0
    %180 = vmatprep.subr.mxu0 0.0
    %181 = vmatpush1.xpose.msra.mxu0 0.0
    %182 = vmatprep.subr.mxu0 0.0
    %183 = vmatpush1.xpose.msra.mxu0 0.0
    %184 = vmatprep.subr.mxu0 0.0
    %185 = vmatpush1.xpose.msra.mxu0 0.0
    %186 = vmatprep.subr.mxu0 0.0
    %187 = vmatpush1.xpose.msra.mxu0 0.0
    %188 = vmatprep.subr.mxu0 0.0
    %189 = vmatpush1.xpose.msra.mxu0 0.0
    %190 = vmatprep.mubr.f32.mxu0 0.0
    %191 = vmatmul.mubr.f32.gmra.mrb[0].mxu0 %v108
    %v192 = vpop.f32.mrb[0].mxu0
    %v193 = vadd.f32 0.0, %v192
    %v194 = vpop.f32.mrb[0].mxu0
    %195 = vdwg.mxu0
    %v196 = vadd.f32 %v125, %v193
    %197 = vst [vmem:[#allocation2] sm:$0xff] %v196
    %v198 = vld [vmem:[#allocation3] sm:$0xff]
    %v199 = vmul.f32 %v108, %v108
    %200 = vadd.xlane.f32.xlu0 %v199
    %v201 = vpop.xlane.xlu0 %200
    %v202 = vadd.f32 %v198, %v201
    %vm203 = vcmask 7168
    %204 = vst.msk [vmem:[#allocation3] sm:$0xff] %vm203, %v202
    %p205 = scmp.eq.s32.totalorder 0, 0
    // Predicated region
    $region22: #{tpu_custom_call.1} parent=1 // pred_check
      %p206 = pneg %p205
    $region23: #{tpu_custom_call.1} parent=1 // pred_check_branch
      %208 = sbr.rel (%p206) target = $region25
    $region24: #{tpu_custom_call.1} parent=1 // pred_region
      %v209 = vld [vmem:[#allocation4] sm:$0xff]
      %v210 = vld [vmem:[#allocation4 + $0x8] sm:$0xff]
      %v211 = vld [vmem:[#allocation4 + $0x10] sm:$0xff]
      %v212 = vld [vmem:[#allocation4 + $0x18] sm:$0xff]
      %v213 = vld [vmem:[#allocation4 + $0x20] sm:$0xff]
      %v214 = vld [vmem:[#allocation4 + $0x28] sm:$0xff]
      %v215 = vld [vmem:[#allocation4 + $0x30] sm:$0xff]
      %v216 = vld [vmem:[#allocation4 + $0x38] sm:$0xff]
      %v217 = vld [vmem:[#allocation4 + $0x40] sm:$0xff]
      %v218 = vld [vmem:[#allocation4 + $0x48] sm:$0xff]
      %v219 = vld [vmem:[#allocation4 + $0x50] sm:$0xff]
      %v220 = vld [vmem:[#allocation4 + $0x58] sm:$0xff]
      %v221 = vld [vmem:[#allocation4 + $0x60] sm:$0xff]
      %v222 = vld [vmem:[#allocation4 + $0x68] sm:$0xff]
      %v223 = vld [vmem:[#allocation4 + $0x70] sm:$0xff]
      %v224 = vld [vmem:[#allocation4 + $0x78] sm:$0xff]
      %v225 = vmul.f32 %v109, %v109
      %v226 = vmul.f32 %v110, %v110
      %v227 = vmul.f32 %v111, %v111
      %v228 = vmul.f32 %v112, %v112
      %v229 = vmul.f32 %v113, %v113
      %v230 = vmul.f32 %v114, %v114
      %v231 = vmul.f32 %v115, %v115
      %v232 = vmul.f32 %v116, %v116
      %v233 = vmul.f32 %v117, %v117
      %v234 = vmul.f32 %v118, %v118
      %v235 = vmul.f32 %v119, %v119
      %v236 = vmul.f32 %v120, %v120
      %v237 = vmul.f32 %v121, %v121
      %v238 = vmul.f32 %v122, %v122
      %v239 = vmul.f32 %v123, %v123
      %v240 = vmul.f32 %v124, %v124
      %241 = vadd.xlane.f32.xlu0 %v225
      %v242 = vpop.xlane.xlu0 %241
      %243 = vadd.xlane.f32.xlu0 %v226
      %v244 = vpop.xlane.xlu0 %243
      %245 = vadd.xlane.f32.xlu0 %v227
      %v246 = vpop.xlane.xlu0 %245
      %247 = vadd.xlane.f32.xlu0 %v228
      %v248 = vpop.xlane.xlu0 %247
      %249 = vadd.xlane.f32.xlu0 %v229
      %v250 = vpop.xlane.xlu0 %249
      %251 = vadd.xlane.f32.xlu0 %v230
      %v252 = vpop.xlane.xlu0 %251
      %253 = vadd.xlane.f32.xlu0 %v231
      %v254 = vpop.xlane.xlu0 %253
      %255 = vadd.xlane.f32.xlu0 %v232
      %v256 = vpop.xlane.xlu0 %255
      %257 = vadd.xlane.f32.xlu0 %v233
      %v258 = vpop.xlane.xlu0 %257
      %259 = vadd.xlane.f32.xlu0 %v234
      %v260 = vpop.xlane.xlu0 %259
      %261 = vadd.xlane.f32.xlu0 %v235
      %v262 = vpop.xlane.xlu0 %261
      %263 = vadd.xlane.f32.xlu0 %v236
      %v264 = vpop.xlane.xlu0 %263
      %265 = vadd.xlane.f32.xlu0 %v237
      %v266 = vpop.xlane.xlu0 %265
      %267 = vadd.xlane.f32.xlu0 %v238
      %v268 = vpop.xlane.xlu0 %267
      %269 = vadd.xlane.f32.xlu0 %v239
      %v270 = vpop.xlane.xlu0 %269
      %271 = vadd.xlane.f32.xlu0 %v240
      %v272 = vpop.xlane.xlu0 %271
      %v273 = vadd.f32 %v209, %v242
      %v274 = vadd.f32 %v210, %v244
      %v275 = vadd.f32 %v211, %v246
      %v276 = vadd.f32 %v212, %v248
      %v277 = vadd.f32 %v213, %v250
      %v278 = vadd.f32 %v214, %v252
      %v279 = vadd.f32 %v215, %v254
      %v280 = vadd.f32 %v216, %v256
      %v281 = vadd.f32 %v217, %v258
      %v282 = vadd.f32 %v218, %v260
      %v283 = vadd.f32 %v219, %v262
      %v284 = vadd.f32 %v220, %v264
      %v285 = vadd.f32 %v221, %v266
      %v286 = vadd.f32 %v222, %v268
      %v287 = vadd.f32 %v223, %v270
      %v288 = vadd.f32 %v224, %v272
      %289 = vst.msk [vmem:[#allocation4] sm:$0xff] %vm203, %v273
      %290 = vst.msk [vmem:[#allocation4 + $0x8] sm:$0xff] %vm203, %v274
      %291 = vst.msk [vmem:[#allocation4 + $0x10] sm:$0xff] %vm203, %v275
      %292 = vst.msk [vmem:[#allocation4 + $0x18] sm:$0xff] %vm203, %v276
      %293 = vst.msk [vmem:[#allocation4 + $0x20] sm:$0xff] %vm203, %v277
      %294 = vst.msk [vmem:[#allocation4 + $0x28] sm:$0xff] %vm203, %v278
      %295 = vst.msk [vmem:[#allocation4 + $0x30] sm:$0xff] %vm203, %v279
      %296 = vst.msk [vmem:[#allocation4 + $0x38] sm:$0xff] %vm203, %v280
      %297 = vst.msk [vmem:[#allocation4 + $0x40] sm:$0xff] %vm203, %v281
      %298 = vst.msk [vmem:[#allocation4 + $0x48] sm:$0xff] %vm203, %v282
      %299 = vst.msk [vmem:[#allocation4 + $0x50] sm:$0xff] %vm203, %v283
      %300 = vst.msk [vmem:[#allocation4 + $0x58] sm:$0xff] %vm203, %v284
      %301 = vst.msk [vmem:[#allocation4 + $0x60] sm:$0xff] %vm203, %v285
      %302 = vst.msk [vmem:[#allocation4 + $0x68] sm:$0xff] %vm203, %v286
      %303 = vst.msk [vmem:[#allocation4 + $0x70] sm:$0xff] %vm203, %v287
      %304 = vst.msk [vmem:[#allocation4 + $0x78] sm:$0xff] %vm203, %v288
    $region25: #{tpu_custom_call.1} parent=1 // pred_fallthru
      _
    // Predicated region
    $region26: #{tpu_custom_call.1} parent=1 // pred_check
      %p305 = pneg %p85
    $region27: #{tpu_custom_call.1} parent=1 // pred_check_branch
      %307 = sbr.rel (%p305) target = $region29
    $region28: #{tpu_custom_call.1} parent=1 // pred_region
      %v308 = vld [vmem:[#allocation2] sm:$0xff]
      %v309 = vlaneseq
      %v310 = vand.u32 %v309, 127
      %vm311 = vcmp.lt.s32.totalorder %v310, 4
      %v312 = vsel %vm311, %v308, -1e+30
      %313 = vmax.xlane.f32.xlu0 %v312
      %v314 = vpop.xlane.xlu0 %313
      %v315 = vsub.f32 %v312, %v314
      %v316 = vmul.f32 %v315, 1.442695
      %v317 = vpow.pop %v316
      %318 = vadd.xlane.f32.xlu0 %v317
      %v319 = vpop.xlane.xlu0 %318
      %v320 = vlog2.pop %v319
      %v321 = vmul.f32 %v320, 0.6931472
      %v322 = vadd.f32 %v321, %v314
      %v323 = vld [vmem:[%s2] sm:$0xff]
      %324 = vset.pattern.permute.xlu0 0
      %325 = vperm.xlu0 %324, %v323
      %v326 = vpop.permute.xlu0 %325
      %vm327 = vcmp.eq.s32.totalorder %v310, %v326
      %v328 = vsel %vm327, %v308, 0.0
      %329 = vadd.xlane.f32.xlu0 %v328
      %v330 = vpop.xlane.xlu0 %329
      %v331 = vsub.f32 %v322, %v330
      %s332 = smul.u32 0, 8
      %v333 = vlaneseq
      %v334 = vshrl.u32 %v333, 7
      %v335 = vstv %s332
      %v336 = vadd.s32 %v335, %v334
      %vm337 = vcmp.lt.s32.totalorder %v336, 4
      %v338 = vsel %vm337, %v331, 0.0
      %v339 = vsel %vm203, %v338, 0.0
      %340 = vadd.xlane.f32.xlu0 %v339
      %v341 = vpop.xlane.xlu0 %340
      %v342 = vrot.slane %v341, 4
      %v343 = vadd.f32 %v341, %v342
      %v344 = vrot.slane %v343, 2
      %v345 = vadd.f32 %v343, %v344
      %v346 = vrot.slane %v345, 1
      %v347 = vadd.f32 %v345, %v346
      %s348 = vtos %v347
      %v349 = vld [vmem:[#allocation3] sm:$0xff]
      %v350 = vrsqrt.pop %v349
      %v351 = vmul.f32 %v349, %v350
      %vm352 = vcmp.eq.f32.partialorder %v349, inf
      %v353 = vsel %vm352, %v349, %v351
      %vm354 = vcmp.eq.f32.partialorder %v349, 0.0
      %v355 = vand.u32 %v349, 2147483648
      %v356 = vsel %vm354, %v355, %v353
      %v357 = vsel %vm203, %v356, 0.0
      %358 = vadd.xlane.f32.xlu0 %v357
      %v359 = vpop.xlane.xlu0 %358
      %v360 = vrot.slane %v359, 4
      %v361 = vadd.f32 %v359, %v360
      %v362 = vrot.slane %v361, 2
      %v363 = vadd.f32 %v361, %v362
      %v364 = vrot.slane %v363, 1
      %v365 = vadd.f32 %v363, %v364
      %s366 = vtos %v365
      %s367 = scalar_lea.smem [#allocation8], 0
      %368 = sst [smem:[%s367]] %s348
      // Predicated region
      $region30: #{tpu_custom_call.1} parent=28 // pred_check
        %p369 = pneg %p205
      $region31: #{tpu_custom_call.1} parent=28 // pred_check_branch
        %371 = sbr.rel (%p369) target = $region33
      $region32: #{tpu_custom_call.1} parent=28 // pred_region
        %v372 = vld [vmem:[#allocation4] sm:$0xff]
        %v373 = vld [vmem:[#allocation4 + $0x8] sm:$0xff]
        %v374 = vld [vmem:[#allocation4 + $0x10] sm:$0xff]
        %v375 = vld [vmem:[#allocation4 + $0x18] sm:$0xff]
        %v376 = vld [vmem:[#allocation4 + $0x20] sm:$0xff]
        %v377 = vld [vmem:[#allocation4 + $0x28] sm:$0xff]
        %v378 = vld [vmem:[#allocation4 + $0x30] sm:$0xff]
        %v379 = vld [vmem:[#allocation4 + $0x38] sm:$0xff]
        %v380 = vld [vmem:[#allocation4 + $0x40] sm:$0xff]
        %v381 = vld [vmem:[#allocation4 + $0x48] sm:$0xff]
        %v382 = vld [vmem:[#allocation4 + $0x50] sm:$0xff]
        %v383 = vld [vmem:[#allocation4 + $0x58] sm:$0xff]
        %v384 = vld [vmem:[#allocation4 + $0x60] sm:$0xff]
        %v385 = vld [vmem:[#allocation4 + $0x68] sm:$0xff]
        %v386 = vld [vmem:[#allocation4 + $0x70] sm:$0xff]
        %v387 = vld [vmem:[#allocation4 + $0x78] sm:$0xff]
        %v388 = vrsqrt.pop %v372
        %v389 = vmul.f32 %v372, %v388
        %vm390 = vcmp.eq.f32.partialorder %v372, inf
        %v391 = vsel %vm390, %v372, %v389
        %vm392 = vcmp.eq.f32.partialorder %v372, 0.0
        %v393 = vand.u32 %v372, 2147483648
        %v394 = vsel %vm392, %v393, %v391
        %v395 = vrsqrt.pop %v373
        %v396 = vmul.f32 %v373, %v395
        %vm397 = vcmp.eq.f32.partialorder %v373, inf
        %v398 = vsel %vm397, %v373, %v396
        %vm399 = vcmp.eq.f32.partialorder %v373, 0.0
        %v400 = vand.u32 %v373, 2147483648
        %v401 = vsel %vm399, %v400, %v398
        %v402 = vrsqrt.pop %v374
        %v403 = vmul.f32 %v374, %v402
        %vm404 = vcmp.eq.f32.partialorder %v374, inf
        %v405 = vsel %vm404, %v374, %v403
        %vm406 = vcmp.eq.f32.partialorder %v374, 0.0
        %v407 = vand.u32 %v374, 2147483648
        %v408 = vsel %vm406, %v407, %v405
        %v409 = vrsqrt.pop %v375
        %v410 = vmul.f32 %v375, %v409
        %vm411 = vcmp.eq.f32.partialorder %v375, inf
        %v412 = vsel %vm411, %v375, %v410
        %vm413 = vcmp.eq.f32.partialorder %v375, 0.0
        %v414 = vand.u32 %v375, 2147483648
        %v415 = vsel %vm413, %v414, %v412
        %v416 = vrsqrt.pop %v376
        %v417 = vmul.f32 %v376, %v416
        %vm418 = vcmp.eq.f32.partialorder %v376, inf
        %v419 = vsel %vm418, %v376, %v417
        %vm420 = vcmp.eq.f32.partialorder %v376, 0.0
        %v421 = vand.u32 %v376, 2147483648
        %v422 = vsel %vm420, %v421, %v419
        %v423 = vrsqrt.pop %v377
        %v424 = vmul.f32 %v377, %v423
        %vm425 = vcmp.eq.f32.partialorder %v377, inf
        %v426 = vsel %vm425, %v377, %v424
        %vm427 = vcmp.eq.f32.partialorder %v377, 0.0
        %v428 = vand.u32 %v377, 2147483648
        %v429 = vsel %vm427, %v428, %v426
        %v430 = vrsqrt.pop %v378
        %v431 = vmul.f32 %v378, %v430
        %vm432 = vcmp.eq.f32.partialorder %v378, inf
        %v433 = vsel %vm432, %v378, %v431
        %vm434 = vcmp.eq.f32.partialorder %v378, 0.0
        %v435 = vand.u32 %v378, 2147483648
        %v436 = vsel %vm434, %v435, %v433
        %v437 = vrsqrt.pop %v379
        %v438 = vmul.f32 %v379, %v437
        %vm439 = vcmp.eq.f32.partialorder %v379, inf
        %v440 = vsel %vm439, %v379, %v438
        %vm441 = vcmp.eq.f32.partialorder %v379, 0.0
        %v442 = vand.u32 %v379, 2147483648
        %v443 = vsel %vm441, %v442, %v440
        %v444 = vrsqrt.pop %v380
        %v445 = vmul.f32 %v380, %v444
        %vm446 = vcmp.eq.f32.partialorder %v380, inf
        %v447 = vsel %vm446, %v380, %v445
        %vm448 = vcmp.eq.f32.partialorder %v380, 0.0
        %v449 = vand.u32 %v380, 2147483648
        %v450 = vsel %vm448, %v449, %v447
        %v451 = vrsqrt.pop %v381
        %v452 = vmul.f32 %v381, %v451
        %vm453 = vcmp.eq.f32.partialorder %v381, inf
        %v454 = vsel %vm453, %v381, %v452
        %vm455 = vcmp.eq.f32.partialorder %v381, 0.0
        %v456 = vand.u32 %v381, 2147483648
        %v457 = vsel %vm455, %v456, %v454
        %v458 = vrsqrt.pop %v382
        %v459 = vmul.f32 %v382, %v458
        %vm460 = vcmp.eq.f32.partialorder %v382, inf
        %v461 = vsel %vm460, %v382, %v459
        %vm462 = vcmp.eq.f32.partialorder %v382, 0.0
        %v463 = vand.u32 %v382, 2147483648
        %v464 = vsel %vm462, %v463, %v461
        %v465 = vrsqrt.pop %v383
        %v466 = vmul.f32 %v383, %v465
        %vm467 = vcmp.eq.f32.partialorder %v383, inf
        %v468 = vsel %vm467, %v383, %v466
        %vm469 = vcmp.eq.f32.partialorder %v383, 0.0
        %v470 = vand.u32 %v383, 2147483648
        %v471 = vsel %vm469, %v470, %v468
        %v472 = vrsqrt.pop %v384
        %v473 = vmul.f32 %v384, %v472
        %vm474 = vcmp.eq.f32.partialorder %v384, inf
        %v475 = vsel %vm474, %v384, %v473
        %vm476 = vcmp.eq.f32.partialorder %v384, 0.0
        %v477 = vand.u32 %v384, 2147483648
        %v478 = vsel %vm476, %v477, %v475
        %v479 = vrsqrt.pop %v385
        %v480 = vmul.f32 %v385, %v479
        %vm481 = vcmp.eq.f32.partialorder %v385, inf
        %v482 = vsel %vm481, %v385, %v480
        %vm483 = vcmp.eq.f32.partialorder %v385, 0.0
        %v484 = vand.u32 %v385, 2147483648
        %v485 = vsel %vm483, %v484, %v482
        %v486 = vrsqrt.pop %v386
        %v487 = vmul.f32 %v386, %v486
        %vm488 = vcmp.eq.f32.partialorder %v386, inf
        %v489 = vsel %vm488, %v386, %v487
        %vm490 = vcmp.eq.f32.partialorder %v386, 0.0
        %v491 = vand.u32 %v386, 2147483648
        %v492 = vsel %vm490, %v491, %v489
        %v493 = vrsqrt.pop %v387
        %v494 = vmul.f32 %v387, %v493
        %vm495 = vcmp.eq.f32.partialorder %v387, inf
        %v496 = vsel %vm495, %v387, %v494
        %vm497 = vcmp.eq.f32.partialorder %v387, 0.0
        %v498 = vand.u32 %v387, 2147483648
        %v499 = vsel %vm497, %v498, %v496
        %v500 = vsel %vm203, %v394, 0.0
        %v501 = vsel %vm203, %v401, 0.0
        %v502 = vadd.f32 %v500, %v501
        %v503 = vsel %vm203, %v408, 0.0
        %v504 = vadd.f32 %v502, %v503
        %v505 = vsel %vm203, %v415, 0.0
        %v506 = vadd.f32 %v504, %v505
        %v507 = vsel %vm203, %v422, 0.0
        %v508 = vadd.f32 %v506, %v507
        %v509 = vsel %vm203, %v429, 0.0
        %v510 = vadd.f32 %v508, %v509
        %v511 = vsel %vm203, %v436, 0.0
        %v512 = vadd.f32 %v510, %v511
        %v513 = vsel %vm203, %v443, 0.0
        %v514 = vadd.f32 %v512, %v513
        %v515 = vsel %vm203, %v450, 0.0
        %v516 = vadd.f32 %v514, %v515
        %v517 = vsel %vm203, %v457, 0.0
        %v518 = vadd.f32 %v516, %v517
        %v519 = vsel %vm203, %v464, 0.0
        %v520 = vadd.f32 %v518, %v519
        %v521 = vsel %vm203, %v471, 0.0
        %v522 = vadd.f32 %v520, %v521
        %v523 = vsel %vm203, %v478, 0.0
        %v524 = vadd.f32 %v522, %v523
        %v525 = vsel %vm203, %v485, 0.0
        %v526 = vadd.f32 %v524, %v525
        %v527 = vsel %vm203, %v492, 0.0
        %v528 = vadd.f32 %v526, %v527
        %v529 = vsel %vm203, %v499, 0.0
        %v530 = vadd.f32 %v528, %v529
        %531 = vadd.xlane.f32.xlu0 %v530
        %v532 = vpop.xlane.xlu0 %531
        %v533 = vrot.slane %v532, 4
        %v534 = vadd.f32 %v532, %v533
        %v535 = vrot.slane %v534, 2
        %v536 = vadd.f32 %v534, %v535
        %v537 = vrot.slane %v536, 1
        %v538 = vadd.f32 %v536, %v537
        %s539 = vtos %v538
        %s540 = sadd.f32 %s366, %s539
        %s541 = scalar_lea.smem [#allocation8], 1
        %542 = sst [smem:[%s541]] %s540
      $region33: #{tpu_custom_call.1} parent=28 // pred_fallthru
        _
      %p543 = scmp.ne.s32.totalorder 0, 0
      // Predicated region
      $region34: #{tpu_custom_call.1} parent=28 // pred_check
        %p544 = pneg %p543
      $region35: #{tpu_custom_call.1} parent=28 // pred_check_branch
        %546 = sbr.rel (%p544) target = $region37
      $region36: #{tpu_custom_call.1} parent=28 // pred_region
        %s547 = scalar_lea.smem [#allocation8], 1
        %548 = sst [smem:[%s547]] %s366
      $region37: #{tpu_custom_call.1} parent=28 // pred_fallthru
        _
    $region29: #{tpu_custom_call.1} parent=1 // pred_fallthru
      _
    // Predicated region
    $region38: #{tpu_custom_call.1} parent=1 // pred_check
      _
    $region39: #{tpu_custom_call.1} parent=1 // pred_check_branch
      %550 = sbr.rel (0) target = $region41
    $region40: #{tpu_custom_call.1} parent=1 // pred_region
      %s552 = ssub.s32 16, 16
      %553 = vsyncadd [#allocation7], %s552
      %556 = dma.smem_to_hbm [#allocation8], 16, %s3, [#allocation7]
    $region41: #{tpu_custom_call.1} parent=1 // pred_fallthru
      _
    // Predicated region
    $region42: #{tpu_custom_call.1} parent=1 // pred_check
      _
    $region43: #{tpu_custom_call.1} parent=1 // pred_check_branch
      %558 = sbr.rel (0) target = $region45
    $region44: #{tpu_custom_call.1} parent=1 // pred_region
      %559 = dma.done [#allocation7], 16
    $region45: #{tpu_custom_call.1} parent=1 // pred_fallthru
      _
    %560 = sfence
    %561 = vsyncpa [#allocation6], 1
    %562 = vsyncpa [#allocation7], 1

</llo_original>
